<compile_context>
chip_gen: v6e
topology: v6e:2x2x1
jax: 0.10.0
libtpu: 0.0.40
codegen_flags: <defaults>
</compile_context>

<pallas_src>
import functools

import jax
import jax.numpy as jnp
from jax.experimental import pallas as pl
from jax.experimental.pallas import tpu as pltpu


# --------------------------------------------------------------------------------------
# Kernel 1: sequential GRU recurrence — all T steps inside a single grid iteration.
# --------------------------------------------------------------------------------------
def _recurrence_kernel(nlayers, T, G,
                       x0_ref,    # (T, G)  relu(embedding(tokens)), lane-padded
                       h0_ref,    # (1, G)  initial hidden, lane-padded
                       wih_ref,   # (G, 3G) W_ih, gates r|z|n each at a 128-lane boundary
                       bih_ref,   # (1, 3G)
                       whh_ref,   # (G, 3G) W_hh (layer-0 hidden projection)
                       bhh_ref,   # (1, 3G)
                       wcat_ref,  # (G, 6G) [W_ih | W_hh] fused (layers >= 1, where x == h)
                       bcat_ref,  # (1, 6G)
                       hall_ref,  # out: (T, G) per-step hidden after all layers (resident)
                       hlast_ref, # out: (1, G) final hidden state
                       ig0_ref):  # scratch VMEM: (T, 3G) precomputed layer-0 input gates
    # Prologue: token-only layer-0 input projection for ALL tokens (one M=T matmul).
    ig0_ref[...] = (jnp.dot(x0_ref[...], wih_ref[...],
                            preferred_element_type=jnp.float32) + bih_ref[...])

    def gru_cell(i_g, h_g, h):
        # Gate slices are whole-vreg views (128-lane aligned); pad lanes stay exactly 0.
        r = jax.nn.sigmoid(i_g[:, 0:G] + h_g[:, 0:G])
        z = jax.nn.sigmoid(i_g[:, G:2 * G] + h_g[:, G:2 * G])
        n = jnp.tanh(i_g[:, 2 * G:3 * G] + r * h_g[:, 2 * G:3 * G])
        return (1.0 - z) * n + z * h

    def step(t, h):
        # Layer 0: i_g precomputed above -> a single MXU dot on the sequential chain.
        # (Weights are read from VMEM refs inside the loop; keeping the padded weights live
        #  in vregs across the loop would exceed the 64-vreg budget and spill.)
        i_g = ig0_ref[pl.ds(t, 1), :]                                             # (1, 3G)
        h_g = (jnp.dot(h, whh_ref[...], preferred_element_type=jnp.float32)
               + bhh_ref[...])                                                    # (1, 3G)
        h = gru_cell(i_g, h_g, h)
        # Layers >= 1: x == h, so one fused dot yields both i_g and h_g.
        for _ in range(nlayers - 1):
            c = (jnp.dot(h, wcat_ref[...], preferred_element_type=jnp.float32)
                 + bcat_ref[...])                                                 # (1, 6G)
            h = gru_cell(c[:, 0:3 * G], c[:, 3 * G:6 * G], h)
        # TODO(synk): nn.Dropout(p=0.2) between layers is identity in eval mode; training-mode
        # dropout (random mask + 1/(1-p) scaling) is not implemented here.
        hall_ref[pl.ds(t, 1), :] = h
        return h

    h_final = jax.lax.fori_loop(0, T, step, h0_ref[...])
    hlast_ref[...] = h_final          # written exactly once


# --------------------------------------------------------------------------------------
# Kernel 2: output head (Linear + LogSoftmax), batched over T with a parallel grid.
# --------------------------------------------------------------------------------------
def _output_head_kernel(hall_ref, wout_ref, bout_ref, logp_ref):
    logits = (jnp.dot(hall_ref[...], wout_ref[...],
                      preferred_element_type=jnp.float32) + bout_ref[...])
    m = jnp.max(logits, axis=-1, keepdims=True)
    s = logits - m
    lse = jnp.log(jnp.sum(jnp.exp(s), axis=-1, keepdims=True))
    logp_ref[...] = s - lse


# --------------------------------------------------------------------------------------
# pallas_call builders
# --------------------------------------------------------------------------------------
def _make_recurrence_call(T, G, nlayers):
    kernel = functools.partial(_recurrence_kernel, nlayers, T, G)
    grid_spec = pltpu.PrefetchScalarGridSpec(
        num_scalar_prefetch=0,
        grid=(1,),                                              # single grid step; loop inside
        in_specs=[
            pl.BlockSpec((T, G), lambda i: (0, 0)),             # x0  (relu'd embeddings)
            pl.BlockSpec((1, G), lambda i: (0, 0)),             # h0
            pl.BlockSpec((G, 3 * G), lambda i: (0, 0)),         # W_ih
            pl.BlockSpec((1, 3 * G), lambda i: (0, 0)),         # b_ih
            pl.BlockSpec((G, 3 * G), lambda i: (0, 0)),         # W_hh
            pl.BlockSpec((1, 3 * G), lambda i: (0, 0)),         # b_hh
            pl.BlockSpec((G, 6 * G), lambda i: (0, 0)),         # [W_ih | W_hh]
            pl.BlockSpec((1, 6 * G), lambda i: (0, 0)),         # [b_ih | b_hh]
        ],
        out_specs=[
            pl.BlockSpec((T, G), lambda i: (0, 0)),             # all hidden states
            pl.BlockSpec((1, G), lambda i: (0, 0)),             # final hidden
        ],
        scratch_shapes=[pltpu.VMEM((T, 3 * G), jnp.float32)],   # precomputed layer-0 gates
    )
    return pl.pallas_call(
        kernel,
        grid_spec=grid_spec,
        out_shape=[
            jax.ShapeDtypeStruct((T, G), jnp.float32),
            jax.ShapeDtypeStruct((1, G), jnp.float32),
        ],
        compiler_params=pltpu.CompilerParams(dimension_semantics=("arbitrary",)),
    )


def _row_block(T):
    for tb in (256, 128, 64, 32, 16, 8):
        if T % tb == 0:
            return tb
    return T   # T not a multiple of 8 -> single full-extent block


def _make_head_call(T, G, nout_pad):
    tb = _row_block(T)
    grid_spec = pltpu.PrefetchScalarGridSpec(
        num_scalar_prefetch=0,
        grid=(T // tb,),
        in_specs=[
            pl.BlockSpec((tb, G), lambda i: (i, 0)),            # hidden-state rows
            pl.BlockSpec((G, nout_pad), lambda i: (0, 0)),      # W_out (lane-padded)
            pl.BlockSpec((1, nout_pad), lambda i: (0, 0)),      # b_out (pad lanes = -1e30)
        ],
        out_specs=pl.BlockSpec((tb, nout_pad), lambda i: (i, 0)),
    )
    return pl.pallas_call(
        _output_head_kernel,
        grid_spec=grid_spec,
        out_shape=jax.ShapeDtypeStruct((T, nout_pad), jnp.float32),
        compiler_params=pltpu.CompilerParams(dimension_semantics=("parallel",)),
    )


# --------------------------------------------------------------------------------------
# Wrapper (layout plumbing: gather, lane-align gates, pad vocab)
# --------------------------------------------------------------------------------------
def _pad_gates_w(w, nhid, G):
    # (nhid, 3*nhid) -> (G, 3*G): zero-pad rows to G and each gate's columns to G.
    gates = [jnp.pad(w[:, g * nhid:(g + 1) * nhid], ((0, G - nhid), (0, G - nhid)))
             for g in range(3)]
    return jnp.concatenate(gates, axis=1)


def _pad_gates_b(b, nhid, G):
    gates = [jnp.pad(b[:, g * nhid:(g + 1) * nhid], ((0, 0), (0, G - nhid)))
             for g in range(3)]
    return jnp.concatenate(gates, axis=1)


def decoder_rnn_decode(tokens, hidden, params, nlayers):
    """Run the decoder over a token sequence with the recurrence in ONE pallas_call.

    tokens: (T,) int32; hidden: (1,1,nhid) f32.
    Returns (logp (T, nout), hidden (1,1,nhid)) with the hidden state chained step-to-step.
    """
    tokens = jnp.asarray(tokens, jnp.int32).reshape(-1)
    T = int(tokens.shape[0])
    nhid = int(hidden.shape[-1])
    nout = int(params["w_out"].shape[1])
    G = pl.cdiv(nhid, 128) * 128
    nout_pad = pl.cdiv(nout, 128) * 128
    f32 = jnp.float32

    # Whole-sequence embedding gather + ReLU (one batched gather, not per-token), padded to G.
    x0 = jnp.maximum(jnp.take(params["embedding"].astype(f32), tokens, axis=0), 0.0)
    x0_p = jnp.pad(x0, ((0, 0), (0, G - nhid)))

    wih_p = _pad_gates_w(params["w_ih"].astype(f32), nhid, G)
    whh_p = _pad_gates_w(params["w_hh"].astype(f32), nhid, G)
    bih_p = _pad_gates_b(params["b_ih"].astype(f32), nhid, G)
    bhh_p = _pad_gates_b(params["b_hh"].astype(f32), nhid, G)
    wcat_p = jnp.concatenate([wih_p, whh_p], axis=1)        # (G, 6G)
    bcat_p = jnp.concatenate([bih_p, bhh_p], axis=1)        # (1, 6G)

    h0_p = jnp.pad(hidden.reshape(1, nhid).astype(f32), ((0, 0), (0, G - nhid)))

    # Output head: zero-pad hidden rows; pad vocab lanes with -1e30 bias so the log-softmax
    # over padded lanes is unaffected (exp underflows to 0, max comes from real lanes).
    wout_p = jnp.pad(params["w_out"].astype(f32), ((0, G - nhid), (0, nout_pad - nout)))
    bout_p = jnp.pad(params["b_out"].astype(f32), ((0, 0), (0, nout_pad - nout)),
                     constant_values=-1e30)

    hall, hlast = _make_recurrence_call(T, G, nlayers)(
        x0_p, h0_p, wih_p, bih_p, whh_p, bhh_p, wcat_p, bcat_p)
    logp_pad = _make_head_call(T, G, nout_pad)(hall, wout_p, bout_p)

    return logp_pad[:, :nout], hlast[:, :nhid].reshape(1, 1, nhid)


def decoder_rnn_forward(token, hidden, params, nlayers):
    """Single-step forward matching the PyTorch module: (token, hidden) -> (logp (1,nout), hidden)."""
    logp, h = decoder_rnn_decode(jnp.asarray(token, jnp.int32).reshape(1), hidden, params, nlayers)
    return logp, h


# ----------------------------- pure-JAX reference ------------------------------------------
def decoder_rnn_reference_step(token, h, params, nlayers):
    nhid = h.shape[-1]
    x = jnp.maximum(params["embedding"][token].reshape(1, nhid), 0.0)
    for _ in range(nlayers):
        i_g = x @ params["w_ih"] + params["b_ih"]
        h_g = h @ params["w_hh"] + params["b_hh"]
        r = jax.nn.sigmoid(i_g[:, :nhid] + h_g[:, :nhid])
        z = jax.nn.sigmoid(i_g[:, nhid:2 * nhid] + h_g[:, nhid:2 * nhid])
        n = jnp.tanh(i_g[:, 2 * nhid:] + r * h_g[:, 2 * nhid:])
        h = (1.0 - z) * n + z * h
        x = h
    logits = h @ params["w_out"] + params["b_out"]
    return jax.nn.log_softmax(logits, axis=1), h


def init_params(key, nhid, nout):
    # Layout equivalent to PyTorch: w_ih = gru.weight_ih_l0.T, gates r|z|n concatenated
    # along the output dim, etc.
    ks = jax.random.split(key, 7)
    scale = 0.1
    return {
        "embedding": scale * jax.random.normal(ks[0], (nout, nhid), jnp.float32),
        "w_ih": scale * jax.random.normal(ks[1], (nhid, 3 * nhid), jnp.float32),
        "w_hh": scale * jax.random.normal(ks[2], (nhid, 3 * nhid), jnp.float32),
        "b_ih": scale * jax.random.normal(ks[3], (1, 3 * nhid), jnp.float32),
        "b_hh": scale * jax.random.normal(ks[4], (1, 3 * nhid), jnp.float32),
        "w_out": scale * jax.random.normal(ks[5], (nhid, nout), jnp.float32),
        "b_out": scale * jax.random.normal(ks[6], (1, nout), jnp.float32),
    }


if __name__ == "__main__":
    nhid, nout, nlayers = 32, 48, 2
    T = 8

    key = jax.random.PRNGKey(0)
    pkey, hkey, tkey = jax.random.split(key, 3)
    params = init_params(pkey, nhid, nout)
    hidden = 0.1 * jax.random.normal(hkey, (1, 1, nhid), jnp.float32)
    tokens = jax.random.randint(tkey, (T,), 0, nout, jnp.int32)

    # Full decode sequence (recurrence kernel + batched output-head kernel).
    logp_seq, h_seq = decoder_rnn_decode(tokens, hidden, params, nlayers)
    logp_seq = jax.block_until_ready(logp_seq)
    h_seq = jax.block_until_ready(h_seq)

    # Reference: loop the single-step module forward.
    ref_logps = []
    h_ref = hidden.reshape(1, nhid)
    for i in range(T):
        lp, h_ref = decoder_rnn_reference_step(tokens[i], h_ref, params, nlayers)
        ref_logps.append(lp)
    ref_logp_seq = jnp.concatenate(ref_logps, axis=0)

    assert logp_seq.shape == (T, nout) and h_seq.shape == (1, 1, nhid)
    assert jnp.allclose(logp_seq, ref_logp_seq, atol=1e-2, rtol=1e-2)
    assert jnp.allclose(h_seq.reshape(1, nhid), h_ref, atol=1e-2, rtol=1e-2)

    # Single-step wrapper preserving the original module's (input, hidden) -> (logp, hidden) API.
    logp1, h1 = decoder_rnn_forward(tokens[0], hidden, params, nlayers)
    logp1 = jax.block_until_ready(logp1)
    ref_lp1, ref_h1 = decoder_rnn_reference_step(tokens[0], hidden.reshape(1, nhid), params, nlayers)
    assert jnp.allclose(logp1, ref_lp1, atol=1e-2, rtol=1e-2)
    assert jnp.allclose(h1.reshape(1, nhid), ref_h1, atol=1e-2, rtol=1e-2)

    print("KERNEL_OK")
</pallas_src>

<mosaic_0001>
module attributes {stable_mosaic.version = 11 : i64} {
  func.func @_recurrence_kernel(%arg0: i32, %arg1: memref<8x128xf32, #tpu.memory_space<vmem>>, %arg2: memref<1x128xf32, #tpu.memory_space<vmem>>, %arg3: memref<128x384xf32, #tpu.memory_space<vmem>>, %arg4: memref<1x384xf32, #tpu.memory_space<vmem>>, %arg5: memref<128x384xf32, #tpu.memory_space<vmem>>, %arg6: memref<1x384xf32, #tpu.memory_space<vmem>>, %arg7: memref<128x768xf32, #tpu.memory_space<vmem>>, %arg8: memref<1x768xf32, #tpu.memory_space<vmem>>, %arg9: memref<8x128xf32, #tpu.memory_space<vmem>>, %arg10: memref<1x128xf32, #tpu.memory_space<vmem>>, %arg11: memref<8x384xf32, #tpu.memory_space<vmem>>) attributes {dimension_semantics = [#tpu.dimension_semantics<arbitrary>], iteration_bounds = array<i64: 1>, scalar_prefetch = 0 : i64, scratch_operands = 1 : i64, tpu.core_type = #tpu.core_type<tc>, window_params = [{pipeline_mode = #tpu.pipeline_mode<synchronous>, transform_indices = @transform_0, window_bounds = array<i64: 8, 128>}, {pipeline_mode = #tpu.pipeline_mode<synchronous>, transform_indices = @transform_1, window_bounds = array<i64: 1, 128>}, {pipeline_mode = #tpu.pipeline_mode<synchronous>, transform_indices = @transform_2, window_bounds = array<i64: 128, 384>}, {pipeline_mode = #tpu.pipeline_mode<synchronous>, transform_indices = @transform_3, window_bounds = array<i64: 1, 384>}, {pipeline_mode = #tpu.pipeline_mode<synchronous>, transform_indices = @transform_4, window_bounds = array<i64: 128, 384>}, {pipeline_mode = #tpu.pipeline_mode<synchronous>, transform_indices = @transform_5, window_bounds = array<i64: 1, 384>}, {pipeline_mode = #tpu.pipeline_mode<synchronous>, transform_indices = @transform_6, window_bounds = array<i64: 128, 768>}, {pipeline_mode = #tpu.pipeline_mode<synchronous>, transform_indices = @transform_7, window_bounds = array<i64: 1, 768>}, {pipeline_mode = #tpu.pipeline_mode<synchronous>, transform_indices = @transform_8, window_bounds = array<i64: 8, 128>}, {pipeline_mode = #tpu.pipeline_mode<synchronous>, transform_indices = @transform_9, window_bounds = array<i64: 1, 128>}]} {
    %c0 = arith.constant 0 : index
    %c0_0 = arith.constant 0 : index
    %0 = vector.load %arg1[%c0, %c0_0] : memref<8x128xf32, #tpu.memory_space<vmem>>, vector<8x128xf32>
    %c0_1 = arith.constant 0 : index
    %c0_2 = arith.constant 0 : index
    %1 = vector.load %arg3[%c0_1, %c0_2] : memref<128x384xf32, #tpu.memory_space<vmem>>, vector<128x384xf32>
    %cst = arith.constant dense<0.000000e+00> : vector<8x384xf32>
    %2 = tpu.matmul %0, %1, %cst {dimension_numbers = #tpu.dot_dimension_numbers<[1], [0], [0], [1], [0, 0, 1, 1], [], []>} : vector<8x128xf32>, vector<128x384xf32>, vector<8x384xf32> -> vector<8x384xf32>
    %c0_3 = arith.constant 0 : index
    %c0_4 = arith.constant 0 : index
    %3 = vector.load %arg4[%c0_3, %c0_4] : memref<1x384xf32, #tpu.memory_space<vmem>>, vector<1x384xf32>
    %4 = vector.broadcast %3 : vector<1x384xf32> to vector<8x384xf32>
    %5 = arith.addf %2, %4 : vector<8x384xf32>
    %c0_5 = arith.constant 0 : index
    %c0_6 = arith.constant 0 : index
    %6 = vector.load %arg11[%c0_5, %c0_6] : memref<8x384xf32, #tpu.memory_space<vmem>>, vector<8x384xf32>
    tpu.vector_store %arg11[%c0_5, %c0_6], %5 {strides = array<i32>} : memref<8x384xf32, #tpu.memory_space<vmem>>, vector<8x384xf32>,
    %c0_7 = arith.constant 0 : index
    %c0_8 = arith.constant 0 : index
    %7 = vector.load %arg2[%c0_7, %c0_8] : memref<1x128xf32, #tpu.memory_space<vmem>>, vector<1x128xf32>
    %c0_i32 = arith.constant 0 : i32
    %c8_i32 = arith.constant 8 : i32
    %8 = arith.addi %c0_i32, %c8_i32 : i32
    %c1_i32 = arith.constant 1 : i32
    %9 = scf.for %arg12 = %c0_i32 to %8 step %c1_i32 iter_args(%arg13 = %7) -> (vector<1x128xf32>)  : i32 {
      %11 = arith.index_cast %arg12 : i32 to index
      %c0_12 = arith.constant 0 : index
      %12 = vector.load %arg11[%11, %c0_12] : memref<8x384xf32, #tpu.memory_space<vmem>>, vector<1x384xf32>
      %c0_13 = arith.constant 0 : index
      %c0_14 = arith.constant 0 : index
      %13 = vector.load %arg5[%c0_13, %c0_14] : memref<128x384xf32, #tpu.memory_space<vmem>>, vector<128x384xf32>
      %cst_15 = arith.constant dense<0.000000e+00> : vector<1x384xf32>
      %14 = tpu.matmul %arg13, %13, %cst_15 {dimension_numbers = #tpu.dot_dimension_numbers<[1], [0], [0], [1], [0, 0, 1, 1], [], []>} : vector<1x128xf32>, vector<128x384xf32>, vector<1x384xf32> -> vector<1x384xf32>
      %c0_16 = arith.constant 0 : index
      %c0_17 = arith.constant 0 : index
      %15 = vector.load %arg6[%c0_16, %c0_17] : memref<1x384xf32, #tpu.memory_space<vmem>>, vector<1x384xf32>
      %16 = arith.addf %14, %15 : vector<1x384xf32>
      %17 = vector.extract_strided_slice %12 {offsets = [0, 0], sizes = [1, 128], strides = [1, 1]} : vector<1x384xf32> to vector<1x128xf32>
      %18 = vector.extract_strided_slice %16 {offsets = [0, 0], sizes = [1, 128], strides = [1, 1]} : vector<1x384xf32> to vector<1x128xf32>
      %19 = arith.addf %17, %18 : vector<1x128xf32>
      %20 = arith.negf %19 : vector<1x128xf32>
      %21 = math.exp %20 : vector<1x128xf32>
      %cst_18 = arith.constant 1.000000e+00 : f32
      %22 = vector.broadcast %cst_18 : f32 to vector<1x128xf32>
      %23 = arith.addf %22, %21 : vector<1x128xf32>
      %24 = arith.divf %22, %23 : vector<1x128xf32>
      %25 = vector.extract_strided_slice %12 {offsets = [0, 128], sizes = [1, 128], strides = [1, 1]} : vector<1x384xf32> to vector<1x128xf32>
      %26 = vector.extract_strided_slice %16 {offsets = [0, 128], sizes = [1, 128], strides = [1, 1]} : vector<1x384xf32> to vector<1x128xf32>
      %27 = arith.addf %25, %26 : vector<1x128xf32>
      %28 = arith.negf %27 : vector<1x128xf32>
      %29 = math.exp %28 : vector<1x128xf32>
      %cst_19 = arith.constant 1.000000e+00 : f32
      %30 = vector.broadcast %cst_19 : f32 to vector<1x128xf32>
      %31 = arith.addf %30, %29 : vector<1x128xf32>
      %32 = arith.divf %30, %31 : vector<1x128xf32>
      %33 = vector.extract_strided_slice %12 {offsets = [0, 256], sizes = [1, 128], strides = [1, 1]} : vector<1x384xf32> to vector<1x128xf32>
      %34 = vector.extract_strided_slice %16 {offsets = [0, 256], sizes = [1, 128], strides = [1, 1]} : vector<1x384xf32> to vector<1x128xf32>
      %35 = arith.mulf %24, %34 : vector<1x128xf32>
      %36 = arith.addf %33, %35 : vector<1x128xf32>
      %37 = math.tanh %36 : vector<1x128xf32>
      %cst_20 = arith.constant 1.000000e+00 : f32
      %38 = vector.broadcast %cst_20 : f32 to vector<1x128xf32>
      %39 = arith.subf %38, %32 : vector<1x128xf32>
      %40 = arith.mulf %39, %37 : vector<1x128xf32>
      %41 = arith.mulf %32, %arg13 : vector<1x128xf32>
      %42 = arith.addf %40, %41 : vector<1x128xf32>
      %c0_21 = arith.constant 0 : index
      %c0_22 = arith.constant 0 : index
      %43 = vector.load %arg7[%c0_21, %c0_22] : memref<128x768xf32, #tpu.memory_space<vmem>>, vector<128x768xf32>
      %cst_23 = arith.constant dense<0.000000e+00> : vector<1x768xf32>
      %44 = tpu.matmul %42, %43, %cst_23 {dimension_numbers = #tpu.dot_dimension_numbers<[1], [0], [0], [1], [0, 0, 1, 1], [], []>} : vector<1x128xf32>, vector<128x768xf32>, vector<1x768xf32> -> vector<1x768xf32>
      %c0_24 = arith.constant 0 : index
      %c0_25 = arith.constant 0 : index
      %45 = vector.load %arg8[%c0_24, %c0_25] : memref<1x768xf32, #tpu.memory_space<vmem>>, vector<1x768xf32>
      %46 = arith.addf %44, %45 : vector<1x768xf32>
      %47 = vector.extract_strided_slice %46 {offsets = [0, 0], sizes = [1, 384], strides = [1, 1]} : vector<1x768xf32> to vector<1x384xf32>
      %48 = vector.extract_strided_slice %46 {offsets = [0, 384], sizes = [1, 384], strides = [1, 1]} : vector<1x768xf32> to vector<1x384xf32>
      %49 = vector.extract_strided_slice %47 {offsets = [0, 0], sizes = [1, 128], strides = [1, 1]} : vector<1x384xf32> to vector<1x128xf32>
      %50 = vector.extract_strided_slice %48 {offsets = [0, 0], sizes = [1, 128], strides = [1, 1]} : vector<1x384xf32> to vector<1x128xf32>
      %51 = arith.addf %49, %50 : vector<1x128xf32>
      %52 = arith.negf %51 : vector<1x128xf32>
      %53 = math.exp %52 : vector<1x128xf32>
      %cst_26 = arith.constant 1.000000e+00 : f32
      %54 = vector.broadcast %cst_26 : f32 to vector<1x128xf32>
      %55 = arith.addf %54, %53 : vector<1x128xf32>
      %56 = arith.divf %54, %55 : vector<1x128xf32>
      %57 = vector.extract_strided_slice %47 {offsets = [0, 128], sizes = [1, 128], strides = [1, 1]} : vector<1x384xf32> to vector<1x128xf32>
      %58 = vector.extract_strided_slice %48 {offsets = [0, 128], sizes = [1, 128], strides = [1, 1]} : vector<1x384xf32> to vector<1x128xf32>
      %59 = arith.addf %57, %58 : vector<1x128xf32>
      %60 = arith.negf %59 : vector<1x128xf32>
      %61 = math.exp %60 : vector<1x128xf32>
      %cst_27 = arith.constant 1.000000e+00 : f32
      %62 = vector.broadcast %cst_27 : f32 to vector<1x128xf32>
      %63 = arith.addf %62, %61 : vector<1x128xf32>
      %64 = arith.divf %62, %63 : vector<1x128xf32>
      %65 = vector.extract_strided_slice %47 {offsets = [0, 256], sizes = [1, 128], strides = [1, 1]} : vector<1x384xf32> to vector<1x128xf32>
      %66 = vector.extract_strided_slice %48 {offsets = [0, 256], sizes = [1, 128], strides = [1, 1]} : vector<1x384xf32> to vector<1x128xf32>
      %67 = arith.mulf %56, %66 : vector<1x128xf32>
      %68 = arith.addf %65, %67 : vector<1x128xf32>
      %69 = math.tanh %68 : vector<1x128xf32>
      %cst_28 = arith.constant 1.000000e+00 : f32
      %70 = vector.broadcast %cst_28 : f32 to vector<1x128xf32>
      %71 = arith.subf %70, %64 : vector<1x128xf32>
      %72 = arith.mulf %71, %69 : vector<1x128xf32>
      %73 = arith.mulf %64, %42 : vector<1x128xf32>
      %74 = arith.addf %72, %73 : vector<1x128xf32>
      %75 = arith.index_cast %arg12 : i32 to index
      %c0_29 = arith.constant 0 : index
      %76 = vector.load %arg9[%75, %c0_29] : memref<8x128xf32, #tpu.memory_space<vmem>>, vector<1x128xf32>
      tpu.vector_store %arg9[%75, %c0_29], %74 {strides = array<i32>} : memref<8x128xf32, #tpu.memory_space<vmem>>, vector<1x128xf32>,
      scf.yield %74 : vector<1x128xf32>
    }
    %c8_i32_9 = arith.constant 8 : i32
    %c0_10 = arith.constant 0 : index
    %c0_11 = arith.constant 0 : index
    %10 = vector.load %arg10[%c0_10, %c0_11] : memref<1x128xf32, #tpu.memory_space<vmem>>, vector<1x128xf32>
    tpu.vector_store %arg10[%c0_10, %c0_11], %9 {strides = array<i32>} : memref<1x128xf32, #tpu.memory_space<vmem>>, vector<1x128xf32>,
    return
  }
  func.func @transform_0(%arg0: i32) -> (i32, i32) {
    %c0_i32 = arith.constant 0 : i32
    %c0_i32_0 = arith.constant 0 : i32
    %c0_i32_1 = arith.constant 0 : i32
    return %c0_i32, %c0_i32_0 : i32, i32
  }
  func.func @transform_1(%arg0: i32) -> (i32, i32) {
    %c0_i32 = arith.constant 0 : i32
    %c0_i32_0 = arith.constant 0 : i32
    %c0_i32_1 = arith.constant 0 : i32
    return %c0_i32, %c0_i32_0 : i32, i32
  }
  func.func @transform_2(%arg0: i32) -> (i32, i32) {
    %c0_i32 = arith.constant 0 : i32
    %c0_i32_0 = arith.constant 0 : i32
    %c0_i32_1 = arith.constant 0 : i32
    return %c0_i32, %c0_i32_0 : i32, i32
  }
  func.func @transform_3(%arg0: i32) -> (i32, i32) {
    %c0_i32 = arith.constant 0 : i32
    %c0_i32_0 = arith.constant 0 : i32
    %c0_i32_1 = arith.constant 0 : i32
    return %c0_i32, %c0_i32_0 : i32, i32
  }
  func.func @transform_4(%arg0: i32) -> (i32, i32) {
    %c0_i32 = arith.constant 0 : i32
    %c0_i32_0 = arith.constant 0 : i32
    %c0_i32_1 = arith.constant 0 : i32
    return %c0_i32, %c0_i32_0 : i32, i32
  }
  func.func @transform_5(%arg0: i32) -> (i32, i32) {
    %c0_i32 = arith.constant 0 : i32
    %c0_i32_0 = arith.constant 0 : i32
    %c0_i32_1 = arith.constant 0 : i32
    return %c0_i32, %c0_i32_0 : i32, i32
  }
  func.func @transform_6(%arg0: i32) -> (i32, i32) {
    %c0_i32 = arith.constant 0 : i32
    %c0_i32_0 = arith.constant 0 : i32
    %c0_i32_1 = arith.constant 0 : i32
    return %c0_i32, %c0_i32_0 : i32, i32
  }
  func.func @transform_7(%arg0: i32) -> (i32, i32) {
    %c0_i32 = arith.constant 0 : i32
    %c0_i32_0 = arith.constant 0 : i32
    %c0_i32_1 = arith.constant 0 : i32
    return %c0_i32, %c0_i32_0 : i32, i32
  }
  func.func @transform_8(%arg0: i32) -> (i32, i32) {
    %c0_i32 = arith.constant 0 : i32
    %c0_i32_0 = arith.constant 0 : i32
    %c0_i32_1 = arith.constant 0 : i32
    return %c0_i32, %c0_i32_0 : i32, i32
  }
  func.func @transform_9(%arg0: i32) -> (i32, i32) {
    %c0_i32 = arith.constant 0 : i32
    %c0_i32_0 = arith.constant 0 : i32
    %c0_i32_1 = arith.constant 0 : i32
    return %c0_i32, %c0_i32_0 : i32, i32
  }
}

</mosaic_0001>

<llo_original>
// kernel: tpu_custom_call.1
$region0: #{tpu_custom_call.1}
  #allocation0 [shape = 'u32[]', space=smem, size = 0x4, offset = 0x4, fixed_abs, tag = 'smem constant byte address 0x4 - core index']
  #allocation1 [shape = 'u32[144,128]{1,0:T(1,128)}', space=vmem, size = 0x12000, scoped, tag = 'internal scratch']
  #allocation2 [shape = 'f32[8,384]{1,0:T(8,128)}', space=vmem, size = 0x3000, scoped, tag = 'scratch operand']
  %s0 = inlined_call_operand.hbm [shape: f32[8,128], index: 0, kind: input, shape index: {}]
  %s1 = inlined_call_operand.hbm [shape: f32[1,128], index: 1, kind: input, shape index: {}]
  %s2 = inlined_call_operand.hbm [shape: f32[128,384], index: 2, kind: input, shape index: {}]
  %s3 = inlined_call_operand.vmem [shape: f32[1,384], index: 3, kind: input, shape index: {}]
  %s4 = inlined_call_operand.hbm [shape: f32[128,384], index: 4, kind: input, shape index: {}]
  %s5 = inlined_call_operand.vmem [shape: f32[1,384], index: 5, kind: input, shape index: {}]
  %s6 = inlined_call_operand.hbm [shape: f32[128,768], index: 6, kind: input, shape index: {}]
  %s7 = inlined_call_operand.vmem [shape: f32[1,768], index: 7, kind: input, shape index: {}]
  %s8 = inlined_call_operand.hbm [shape: f32[8,128], index: 8, kind: output, shape index: {0}]
  %s9 = inlined_call_operand.hbm [shape: f32[1,128], index: 9, kind: output, shape index: {1}]
  %10 = xla_tuple %s8, %s9
  %s11 = sld [smem:[#allocation0]]
  $region77: #{tpu_custom_call.1} parent=0
    _
  %s13 = ssub.s32 1, %s11
  %s14 = scalar_select 0, %s13, %s11
  $region1: #{tpu_custom_call.1} parent=0
    #allocation3 [shape = 'u8[4096]{0}', space=vmem, size = 0x1000, scoped, tag = 'input window, operand 0, single buffered']
    #allocation4 [shape = 's32[1]{0}', space=sflag, size = 0x4, scoped, tag = 'scoped memory for tpu_custom_call.1']
    #allocation5 [shape = 's32[1]{0}', space=sflag, size = 0x4, scoped, tag = 'scoped memory for tpu_custom_call.1']
    #allocation6 [shape = 'u8[512]{0}', space=vmem, size = 0x400, scoped, tag = 'input window, operand 1, single buffered']
    #allocation7 [shape = 's32[1]{0}', space=sflag, size = 0x4, scoped, tag = 'scoped memory for tpu_custom_call.1']
    #allocation8 [shape = 'u8[196608]{0}', space=vmem, size = 0x30000, scoped, tag = 'input window, operand 2, single buffered']
    #allocation9 [shape = 'u8[196608]{0}', space=vmem, size = 0x30000, scoped, tag = 'input window, operand 4, single buffered']
    #allocation10 [shape = 's32[1]{0}', space=sflag, size = 0x4, scoped, tag = 'scoped memory for tpu_custom_call.1']
    #allocation11 [shape = 'u8[393216]{0}', space=vmem, size = 0x60000, scoped, tag = 'input window, operand 6, single buffered']
    #allocation12 [shape = 'u8[4096]{0}', space=vmem, size = 0x1000, scoped, tag = 'output window, operand 0, single buffered']
    #allocation13 [shape = 'u8[512]{0}', space=vmem, size = 0x400, scoped, tag = 'output window, operand 1, single buffered']
    #allocation14 [shape = 's32[1]{0}', space=sflag, size = 0x4, scoped, tag = 'scoped memory for tpu_custom_call.1']
    %15 = vsyncpa [#allocation4], 0
    %16 = vsyncpa [#allocation7], 0
    %17 = vsyncpa [#allocation10], 0
    %18 = vsyncpa [#allocation5], 0
    %19 = vsyncpa [#allocation14], 0
    // Predicated region
    $region2: #{tpu_custom_call.1} parent=1 // pred_check
      _
    $region3: #{tpu_custom_call.1} parent=1 // pred_check_branch
      %21 = sbr.rel (0) target = $region5
    $region4: #{tpu_custom_call.1} parent=1 // pred_region
      %s23 = ssub.s32 128, 128
      %24 = vsyncadd [#allocation4], %s23
      %s26 = sshll.u32 [#allocation3], 4
      %s27 = int_to_ptr.vmem [resolvable:$true] %s26
      %29 = dma.hbm_to_vmem [thread:$0]  %s0, 128, %s27, [#allocation4]
    $region5: #{tpu_custom_call.1} parent=1 // pred_fallthru
      _
    // Predicated region
    $region6: #{tpu_custom_call.1} parent=1 // pred_check
      _
    $region7: #{tpu_custom_call.1} parent=1 // pred_check_branch
      %31 = sbr.rel (0) target = $region9
    $region8: #{tpu_custom_call.1} parent=1 // pred_region
      %s33 = ssub.s32 16, 16
      %34 = vsyncadd [#allocation7], %s33
      %s36 = sshll.u32 [#allocation6], 4
      %s37 = int_to_ptr.vmem [resolvable:$true] %s36
      %39 = dma.hbm_to_vmem [thread:$0]  %s1, 16, %s37, [#allocation7]
    $region9: #{tpu_custom_call.1} parent=1 // pred_fallthru
      _
    // Predicated region
    $region10: #{tpu_custom_call.1} parent=1 // pred_check
      _
    $region11: #{tpu_custom_call.1} parent=1 // pred_check_branch
      %41 = sbr.rel (0) target = $region13
    $region12: #{tpu_custom_call.1} parent=1 // pred_region
      %s43 = ssub.s32 6144, 6144
      %44 = vsyncadd [#allocation7], %s43
      %s45 = sshll.u32 [#allocation8], 4
      %s46 = int_to_ptr.vmem [resolvable:$true] %s45
      %51 = dma.hbm_to_vmem [thread:$0]  %s2, 6144, %s46, [#allocation7], 384, 384, 24
    $region13: #{tpu_custom_call.1} parent=1 // pred_fallthru
      _
    // Predicated region
    $region14: #{tpu_custom_call.1} parent=1 // pred_check
      _
    $region15: #{tpu_custom_call.1} parent=1 // pred_check_branch
      %53 = sbr.rel (0) target = $region17
    $region16: #{tpu_custom_call.1} parent=1 // pred_region
      _
    $region17: #{tpu_custom_call.1} parent=1 // pred_fallthru
      _
    // Predicated region
    $region18: #{tpu_custom_call.1} parent=1 // pred_check
      _
    $region19: #{tpu_custom_call.1} parent=1 // pred_check_branch
      %55 = sbr.rel (0) target = $region21
    $region20: #{tpu_custom_call.1} parent=1 // pred_region
      %s57 = ssub.s32 6144, 6144
      %58 = vsyncadd [#allocation10], %s57
      %s59 = sshll.u32 [#allocation9], 4
      %s60 = int_to_ptr.vmem [resolvable:$true] %s59
      %65 = dma.hbm_to_vmem [thread:$0]  %s4, 6144, %s60, [#allocation10], 384, 384, 24
    $region21: #{tpu_custom_call.1} parent=1 // pred_fallthru
      _
    // Predicated region
    $region22: #{tpu_custom_call.1} parent=1 // pred_check
      _
    $region23: #{tpu_custom_call.1} parent=1 // pred_check_branch
      %67 = sbr.rel (0) target = $region25
    $region24: #{tpu_custom_call.1} parent=1 // pred_region
      _
    $region25: #{tpu_custom_call.1} parent=1 // pred_fallthru
      _
    // Predicated region
    $region26: #{tpu_custom_call.1} parent=1 // pred_check
      _
    $region27: #{tpu_custom_call.1} parent=1 // pred_check_branch
      %69 = sbr.rel (0) target = $region29
    $region28: #{tpu_custom_call.1} parent=1 // pred_region
      %s71 = ssub.s32 12288, 12288
      %72 = vsyncadd [#allocation10], %s71
      %s73 = sshll.u32 [#allocation11], 4
      %s74 = int_to_ptr.vmem [resolvable:$true] %s73
      %79 = dma.hbm_to_vmem [thread:$0]  %s6, 12288, %s74, [#allocation10], 768, 768, 48
    $region29: #{tpu_custom_call.1} parent=1 // pred_fallthru
      _
    // Predicated region
    $region30: #{tpu_custom_call.1} parent=1 // pred_check
      _
    $region31: #{tpu_custom_call.1} parent=1 // pred_check_branch
      %81 = sbr.rel (0) target = $region33
    $region32: #{tpu_custom_call.1} parent=1 // pred_region
      _
    $region33: #{tpu_custom_call.1} parent=1 // pred_fallthru
      _
    // Predicated region
    $region34: #{tpu_custom_call.1} parent=1 // pred_check
      _
    $region35: #{tpu_custom_call.1} parent=1 // pred_check_branch
      %83 = sbr.rel (0) target = $region37
    $region36: #{tpu_custom_call.1} parent=1 // pred_region
      %84 = dma.done [#allocation4], 128
    $region37: #{tpu_custom_call.1} parent=1 // pred_fallthru
      _
    // Predicated region
    $region38: #{tpu_custom_call.1} parent=1 // pred_check
      _
    $region39: #{tpu_custom_call.1} parent=1 // pred_check_branch
      %86 = sbr.rel (0) target = $region41
    $region40: #{tpu_custom_call.1} parent=1 // pred_region
      %87 = dma.done [#allocation7], 16
    $region41: #{tpu_custom_call.1} parent=1 // pred_fallthru
      _
    // Predicated region
    $region42: #{tpu_custom_call.1} parent=1 // pred_check
      _
    $region43: #{tpu_custom_call.1} parent=1 // pred_check_branch
      %89 = sbr.rel (0) target = $region45
    $region44: #{tpu_custom_call.1} parent=1 // pred_region
      %90 = dma.done [#allocation7], 6144
    $region45: #{tpu_custom_call.1} parent=1 // pred_fallthru
      _
    // Predicated region
    $region46: #{tpu_custom_call.1} parent=1 // pred_check
      _
    $region47: #{tpu_custom_call.1} parent=1 // pred_check_branch
      %92 = sbr.rel (0) target = $region49
    $region48: #{tpu_custom_call.1} parent=1 // pred_region
      %93 = dma.done [#allocation10], 6144
    $region49: #{tpu_custom_call.1} parent=1 // pred_fallthru
      _
    // Predicated region
    $region50: #{tpu_custom_call.1} parent=1 // pred_check
      _
    $region51: #{tpu_custom_call.1} parent=1 // pred_check_branch
      %95 = sbr.rel (0) target = $region53
    $region52: #{tpu_custom_call.1} parent=1 // pred_region
      %96 = dma.done [#allocation10], 12288
    $region53: #{tpu_custom_call.1} parent=1 // pred_fallthru
      _
    %v97 = vld [vmem:[#allocation3] sm:$0xff]
    %v98 = vld [vmem:[#allocation8] sm:$0xff]
    %v99 = vld [vmem:[#allocation8 + $0x8] sm:$0xff]
    %v100 = vld [vmem:[#allocation8 + $0x10] sm:$0xff]
    %v101 = vld [vmem:[#allocation8 + $0x18] sm:$0xff]
    %v102 = vld [vmem:[#allocation8 + $0x20] sm:$0xff]
    %v103 = vld [vmem:[#allocation8 + $0x28] sm:$0xff]
    %v104 = vld [vmem:[#allocation8 + $0x30] sm:$0xff]
    %v105 = vld [vmem:[#allocation8 + $0x38] sm:$0xff]
    %v106 = vld [vmem:[#allocation8 + $0x40] sm:$0xff]
    %v107 = vld [vmem:[#allocation8 + $0x48] sm:$0xff]
    %v108 = vld [vmem:[#allocation8 + $0x50] sm:$0xff]
    %v109 = vld [vmem:[#allocation8 + $0x58] sm:$0xff]
    %v110 = vld [vmem:[#allocation8 + $0x60] sm:$0xff]
    %v111 = vld [vmem:[#allocation8 + $0x68] sm:$0xff]
    %v112 = vld [vmem:[#allocation8 + $0x70] sm:$0xff]
    %v113 = vld [vmem:[#allocation8 + $0x78] sm:$0xff]
    %v114 = vld [vmem:[#allocation8 + $0x80] sm:$0xff]
    %v115 = vld [vmem:[#allocation8 + $0x88] sm:$0xff]
    %v116 = vld [vmem:[#allocation8 + $0x90] sm:$0xff]
    %v117 = vld [vmem:[#allocation8 + $0x98] sm:$0xff]
    %v118 = vld [vmem:[#allocation8 + $0xa0] sm:$0xff]
    %v119 = vld [vmem:[#allocation8 + $0xa8] sm:$0xff]
    %v120 = vld [vmem:[#allocation8 + $0xb0] sm:$0xff]
    %v121 = vld [vmem:[#allocation8 + $0xb8] sm:$0xff]
    %v122 = vld [vmem:[#allocation8 + $0xc0] sm:$0xff]
    %v123 = vld [vmem:[#allocation8 + $0xc8] sm:$0xff]
    %v124 = vld [vmem:[#allocation8 + $0xd0] sm:$0xff]
    %v125 = vld [vmem:[#allocation8 + $0xd8] sm:$0xff]
    %v126 = vld [vmem:[#allocation8 + $0xe0] sm:$0xff]
    %v127 = vld [vmem:[#allocation8 + $0xe8] sm:$0xff]
    %v128 = vld [vmem:[#allocation8 + $0xf0] sm:$0xff]
    %v129 = vld [vmem:[#allocation8 + $0xf8] sm:$0xff]
    %v130 = vld [vmem:[#allocation8 + $0x100] sm:$0xff]
    %v131 = vld [vmem:[#allocation8 + $0x108] sm:$0xff]
    %v132 = vld [vmem:[#allocation8 + $0x110] sm:$0xff]
    %v133 = vld [vmem:[#allocation8 + $0x118] sm:$0xff]
    %v134 = vld [vmem:[#allocation8 + $0x120] sm:$0xff]
    %v135 = vld [vmem:[#allocation8 + $0x128] sm:$0xff]
    %v136 = vld [vmem:[#allocation8 + $0x130] sm:$0xff]
    %v137 = vld [vmem:[#allocation8 + $0x138] sm:$0xff]
    %v138 = vld [vmem:[#allocation8 + $0x140] sm:$0xff]
    %v139 = vld [vmem:[#allocation8 + $0x148] sm:$0xff]
    %v140 = vld [vmem:[#allocation8 + $0x150] sm:$0xff]
    %v141 = vld [vmem:[#allocation8 + $0x158] sm:$0xff]
    %v142 = vld [vmem:[#allocation8 + $0x160] sm:$0xff]
    %v143 = vld [vmem:[#allocation8 + $0x168] sm:$0xff]
    %v144 = vld [vmem:[#allocation8 + $0x170] sm:$0xff]
    %v145 = vld [vmem:[#allocation8 + $0x178] sm:$0xff]
    %v146 = vld [vmem:[%s3] sm:$0x7]
    %v148 = vlaneseq
    %v149 = vshrl.u32 %v148, 7
    %v150 = vsub.s32 0, %v149
    %v151 = vrot.slane %v146, %v150
    %v152 = vlaneseq
    %v153 = vshrl.u32 %v152, 7
    %v154 = vsub.s32 1, %v153
    %v155 = vrot.slane %v146, %v154
    %v156 = vlaneseq
    %v157 = vshrl.u32 %v156, 7
    %v158 = vsub.s32 2, %v157
    %v159 = vrot.slane %v146, %v158
    %163 = vmatprep.subr.mxu0 %v144
    %164 = vmatpush1.msra.mxu0 %v143
    %165 = vmatprep.subr.mxu0 %v141
    %166 = vmatpush1.msra.mxu0 %v140
    %167 = vmatprep.subr.mxu0 %v138
    %168 = vmatpush1.msra.mxu0 %v137
    %169 = vmatprep.subr.mxu0 %v135
    %170 = vmatpush1.msra.mxu0 %v134
    %171 = vmatprep.subr.mxu0 %v132
    %172 = vmatpush1.msra.mxu0 %v131
    %173 = vmatprep.subr.mxu0 %v129
    %174 = vmatpush1.msra.mxu0 %v128
    %175 = vmatprep.subr.mxu0 %v126
    %176 = vmatpush1.msra.mxu0 %v125
    %177 = vmatprep.subr.mxu0 %v123
    %178 = vmatpush1.msra.mxu0 %v122
    %179 = vmatprep.subr.mxu0 %v120
    %180 = vmatpush1.msra.mxu0 %v119
    %181 = vmatprep.subr.mxu0 %v117
    %182 = vmatpush1.msra.mxu0 %v116
    %183 = vmatprep.subr.mxu0 %v114
    %184 = vmatpush1.msra.mxu0 %v113
    %185 = vmatprep.subr.mxu0 %v111
    %186 = vmatpush1.msra.mxu0 %v110
    %187 = vmatprep.subr.mxu0 %v108
    %188 = vmatpush1.msra.mxu0 %v107
    %189 = vmatprep.subr.mxu0 %v105
    %190 = vmatpush1.msra.mxu0 %v104
    %191 = vmatprep.subr.mxu0 %v102
    %192 = vmatpush1.msra.mxu0 %v101
    %193 = vmatprep.subr.mxu0 %v99
    %194 = vmatpush1.msra.mxu0 %v98
    %195 = vmatprep.subr.mxu0 0.0
    %196 = vmatpush2.msra.mxu0 0.0
    %197 = vmatprep.subr.mxu0 0.0
    %198 = vmatpush2.msra.mxu0 0.0
    %199 = vmatprep.subr.mxu0 0.0
    %200 = vmatpush2.msra.mxu0 0.0
    %201 = vmatprep.subr.mxu0 0.0
    %202 = vmatpush2.msra.mxu0 0.0
    %203 = vmatprep.subr.mxu0 0.0
    %204 = vmatpush2.msra.mxu0 0.0
    %205 = vmatprep.subr.mxu0 0.0
    %206 = vmatpush2.msra.mxu0 0.0
    %207 = vmatprep.subr.mxu0 0.0
    %208 = vmatpush2.msra.mxu0 0.0
    %209 = vmatprep.subr.mxu0 0.0
    %210 = vmatpush2.msra.mxu0 0.0
    %211 = vmatprep.subr.mxu0 0.0
    %212 = vmatpush2.msra.mxu0 0.0
    %213 = vmatprep.subr.mxu0 0.0
    %214 = vmatpush2.msra.mxu0 0.0
    %215 = vmatprep.subr.mxu0 0.0
    %216 = vmatpush2.msra.mxu0 0.0
    %217 = vmatprep.subr.mxu0 0.0
    %218 = vmatpush2.msra.mxu0 0.0
    %219 = vmatprep.subr.mxu0 0.0
    %220 = vmatpush2.msra.mxu0 0.0
    %221 = vmatprep.subr.mxu0 0.0
    %222 = vmatpush2.msra.mxu0 0.0
    %223 = vmatprep.subr.mxu0 0.0
    %224 = vmatpush2.msra.mxu0 0.0
    %225 = vmatprep.subr.mxu0 0.0
    %226 = vmatpush2.msra.mxu0 0.0
    %227 = vmatprep.mubr.f32.mxu0 0.0
    %228 = vmatmul.mubr.f32.gmra.mxu0 %v97
    %v229 = vpop.f32.mrf.mxu0
    %v230 = vadd.f32 %v151, %v229
    %v231 = vpop.f32.mrf.mxu0
    %v232 = vadd.f32 %v155, %v231
    %233 = vdwg.mxu0
    %234 = vmatprep.subr.mxu0 0.0
    %235 = vmatpush1.msra.mxu0 %v145
    %236 = vmatprep.subr.mxu0 0.0
    %237 = vmatpush1.msra.mxu0 %v142
    %238 = vmatprep.subr.mxu0 0.0
    %239 = vmatpush1.msra.mxu0 %v139
    %240 = vmatprep.subr.mxu0 0.0
    %241 = vmatpush1.msra.mxu0 %v136
    %242 = vmatprep.subr.mxu0 0.0
    %243 = vmatpush1.msra.mxu0 %v133
    %244 = vmatprep.subr.mxu0 0.0
    %245 = vmatpush1.msra.mxu0 %v130
    %246 = vmatprep.subr.mxu0 0.0
    %247 = vmatpush1.msra.mxu0 %v127
    %248 = vmatprep.subr.mxu0 0.0
    %249 = vmatpush1.msra.mxu0 %v124
    %250 = vmatprep.subr.mxu0 0.0
    %251 = vmatpush1.msra.mxu0 %v121
    %252 = vmatprep.subr.mxu0 0.0
    %253 = vmatpush1.msra.mxu0 %v118
    %254 = vmatprep.subr.mxu0 0.0
    %255 = vmatpush1.msra.mxu0 %v115
    %256 = vmatprep.subr.mxu0 0.0
    %257 = vmatpush1.msra.mxu0 %v112
    %258 = vmatprep.subr.mxu0 0.0
    %259 = vmatpush1.msra.mxu0 %v109
    %260 = vmatprep.subr.mxu0 0.0
    %261 = vmatpush1.msra.mxu0 %v106
    %262 = vmatprep.subr.mxu0 0.0
    %263 = vmatpush1.msra.mxu0 %v103
    %264 = vmatprep.subr.mxu0 0.0
    %265 = vmatpush1.msra.mxu0 %v100
    %266 = vmatprep.subr.mxu0 0.0
    %267 = vmatpush2.msra.mxu0 0.0
    %268 = vmatprep.subr.mxu0 0.0
    %269 = vmatpush2.msra.mxu0 0.0
    %270 = vmatprep.subr.mxu0 0.0
    %271 = vmatpush2.msra.mxu0 0.0
    %272 = vmatprep.subr.mxu0 0.0
    %273 = vmatpush2.msra.mxu0 0.0
    %274 = vmatprep.subr.mxu0 0.0
    %275 = vmatpush2.msra.mxu0 0.0
    %276 = vmatprep.subr.mxu0 0.0
    %277 = vmatpush2.msra.mxu0 0.0
    %278 = vmatprep.subr.mxu0 0.0
    %279 = vmatpush2.msra.mxu0 0.0
    %280 = vmatprep.subr.mxu0 0.0
    %281 = vmatpush2.msra.mxu0 0.0
    %282 = vmatprep.subr.mxu0 0.0
    %283 = vmatpush2.msra.mxu0 0.0
    %284 = vmatprep.subr.mxu0 0.0
    %285 = vmatpush2.msra.mxu0 0.0
    %286 = vmatprep.subr.mxu0 0.0
    %287 = vmatpush2.msra.mxu0 0.0
    %288 = vmatprep.subr.mxu0 0.0
    %289 = vmatpush2.msra.mxu0 0.0
    %290 = vmatprep.subr.mxu0 0.0
    %291 = vmatpush2.msra.mxu0 0.0
    %292 = vmatprep.subr.mxu0 0.0
    %293 = vmatpush2.msra.mxu0 0.0
    %294 = vmatprep.subr.mxu0 0.0
    %295 = vmatpush2.msra.mxu0 0.0
    %296 = vmatprep.subr.mxu0 0.0
    %297 = vmatpush2.msra.mxu0 0.0
    %298 = vmatprep.mubr.f32.mxu0 0.0
    %299 = vmatmul.mubr.f32.gmra.mxu0 %v97
    %v300 = vpop.f32.mrf.mxu0
    %v301 = vadd.f32 %v159, %v300
    %v302 = vpop.f32.mrf.mxu0
    %303 = vdwg.mxu0
    %304 = vst [vmem:[#allocation2] sm:$0xff] %v230
    %305 = vst [vmem:[#allocation2 + $0x8] sm:$0xff] %v232
    %306 = vst [vmem:[#allocation2 + $0x10] sm:$0xff] %v301
    %v307 = vld [vmem:[#allocation6] sm:$0x1]
    loop: start=0, step=1, limit=8
    $region54: #{tpu_custom_call.1} parent=1 // loop_pre_header
      _
    $region55: #{tpu_custom_call.1} parent=1 // loop_header
      %s309 = sphi 0, %s313
      %p310 = scmp.ge.s32.totalorder %s309, 8
      %v314 = vphi %v307, %v917
    $region56: #{tpu_custom_call.1} parent=1 // loop_header_branch
      %312 = sbr.rel (%p310) target = $region60
    $region57: #{tpu_custom_call.1} parent=1 // loop_body
      %s315 = sshra.s32 %s309, 3
      %s316 = sand.u32 %s309, 7
      %s317 = sshra.s32 %s309, 3
      %s318 = sand.u32 %s309, 7
      %s319 = smul.u32 %s315, 3
      %s320 = smul.u32 %s319, 8
      %s321 = sadd.s32 %s320, %s318
      %s322 = scalar_lea.vmem [#allocation2], %s321
      %v323 = vld [vmem:[%s322] ss:$8 sm:$0x7]
      %v324 = vld [vmem:[#allocation9] sm:$0xff]
      %v325 = vld [vmem:[#allocation9 + $0x8] sm:$0xff]
      %v326 = vld [vmem:[#allocation9 + $0x10] sm:$0xff]
      %v327 = vld [vmem:[#allocation9 + $0x18] sm:$0xff]
      %v328 = vld [vmem:[#allocation9 + $0x20] sm:$0xff]
      %v329 = vld [vmem:[#allocation9 + $0x28] sm:$0xff]
      %v330 = vld [vmem:[#allocation9 + $0x30] sm:$0xff]
      %v331 = vld [vmem:[#allocation9 + $0x38] sm:$0xff]
      %v332 = vld [vmem:[#allocation9 + $0x40] sm:$0xff]
      %v333 = vld [vmem:[#allocation9 + $0x48] sm:$0xff]
      %v334 = vld [vmem:[#allocation9 + $0x50] sm:$0xff]
      %v335 = vld [vmem:[#allocation9 + $0x58] sm:$0xff]
      %v336 = vld [vmem:[#allocation9 + $0x60] sm:$0xff]
      %v337 = vld [vmem:[#allocation9 + $0x68] sm:$0xff]
      %v338 = vld [vmem:[#allocation9 + $0x70] sm:$0xff]
      %v339 = vld [vmem:[#allocation9 + $0x78] sm:$0xff]
      %v340 = vld [vmem:[#allocation9 + $0x80] sm:$0xff]
      %v341 = vld [vmem:[#allocation9 + $0x88] sm:$0xff]
      %v342 = vld [vmem:[#allocation9 + $0x90] sm:$0xff]
      %v343 = vld [vmem:[#allocation9 + $0x98] sm:$0xff]
      %v344 = vld [vmem:[#allocation9 + $0xa0] sm:$0xff]
      %v345 = vld [vmem:[#allocation9 + $0xa8] sm:$0xff]
      %v346 = vld [vmem:[#allocation9 + $0xb0] sm:$0xff]
      %v347 = vld [vmem:[#allocation9 + $0xb8] sm:$0xff]
      %v348 = vld [vmem:[#allocation9 + $0xc0] sm:$0xff]
      %v349 = vld [vmem:[#allocation9 + $0xc8] sm:$0xff]
      %v350 = vld [vmem:[#allocation9 + $0xd0] sm:$0xff]
      %v351 = vld [vmem:[#allocation9 + $0xd8] sm:$0xff]
      %v352 = vld [vmem:[#allocation9 + $0xe0] sm:$0xff]
      %v353 = vld [vmem:[#allocation9 + $0xe8] sm:$0xff]
      %v354 = vld [vmem:[#allocation9 + $0xf0] sm:$0xff]
      %v355 = vld [vmem:[#allocation9 + $0xf8] sm:$0xff]
      %v356 = vld [vmem:[#allocation9 + $0x100] sm:$0xff]
      %v357 = vld [vmem:[#allocation9 + $0x108] sm:$0xff]
      %v358 = vld [vmem:[#allocation9 + $0x110] sm:$0xff]
      %v359 = vld [vmem:[#allocation9 + $0x118] sm:$0xff]
      %v360 = vld [vmem:[#allocation9 + $0x120] sm:$0xff]
      %v361 = vld [vmem:[#allocation9 + $0x128] sm:$0xff]
      %v362 = vld [vmem:[#allocation9 + $0x130] sm:$0xff]
      %v363 = vld [vmem:[#allocation9 + $0x138] sm:$0xff]
      %v364 = vld [vmem:[#allocation9 + $0x140] sm:$0xff]
      %v365 = vld [vmem:[#allocation9 + $0x148] sm:$0xff]
      %v366 = vld [vmem:[#allocation9 + $0x150] sm:$0xff]
      %v367 = vld [vmem:[#allocation9 + $0x158] sm:$0xff]
      %v368 = vld [vmem:[#allocation9 + $0x160] sm:$0xff]
      %v369 = vld [vmem:[#allocation9 + $0x168] sm:$0xff]
      %v370 = vld [vmem:[#allocation9 + $0x170] sm:$0xff]
      %v371 = vld [vmem:[#allocation9 + $0x178] sm:$0xff]
      %v372 = vld [vmem:[%s5] sm:$0x7]
      %v374 = vlaneseq
      %v375 = vshrl.u32 %v374, 7
      %v376 = vsub.s32 0, %v375
      %v377 = vrot.slane %v372, %v376
      %v378 = vlaneseq
      %v379 = vshrl.u32 %v378, 7
      %v380 = vsub.s32 1, %v379
      %v381 = vrot.slane %v372, %v380
      %v382 = vlaneseq
      %v383 = vshrl.u32 %v382, 7
      %v384 = vsub.s32 2, %v383
      %v385 = vrot.slane %v372, %v384
      %389 = vmatprep.subr.mxu0 %v370
      %390 = vmatpush1.msra.mxu0 %v369
      %391 = vmatprep.subr.mxu0 %v367
      %392 = vmatpush1.msra.mxu0 %v366
      %393 = vmatprep.subr.mxu0 %v364
      %394 = vmatpush1.msra.mxu0 %v363
      %395 = vmatprep.subr.mxu0 %v361
      %396 = vmatpush1.msra.mxu0 %v360
      %397 = vmatprep.subr.mxu0 %v358
      %398 = vmatpush1.msra.mxu0 %v357
      %399 = vmatprep.subr.mxu0 %v355
      %400 = vmatpush1.msra.mxu0 %v354
      %401 = vmatprep.subr.mxu0 %v352
      %402 = vmatpush1.msra.mxu0 %v351
      %403 = vmatprep.subr.mxu0 %v349
      %404 = vmatpush1.msra.mxu0 %v348
      %405 = vmatprep.subr.mxu0 %v346
      %406 = vmatpush1.msra.mxu0 %v345
      %407 = vmatprep.subr.mxu0 %v343
      %408 = vmatpush1.msra.mxu0 %v342
      %409 = vmatprep.subr.mxu0 %v340
      %410 = vmatpush1.msra.mxu0 %v339
      %411 = vmatprep.subr.mxu0 %v337
      %412 = vmatpush1.msra.mxu0 %v336
      %413 = vmatprep.subr.mxu0 %v334
      %414 = vmatpush1.msra.mxu0 %v333
      %415 = vmatprep.subr.mxu0 %v331
      %416 = vmatpush1.msra.mxu0 %v330
      %417 = vmatprep.subr.mxu0 %v328
      %418 = vmatpush1.msra.mxu0 %v327
      %419 = vmatprep.subr.mxu0 %v325
      %420 = vmatpush1.msra.mxu0 %v324
      %421 = vmatprep.subr.mxu0 0.0
      %422 = vmatpush2.msra.mxu0 0.0
      %423 = vmatprep.subr.mxu0 0.0
      %424 = vmatpush2.msra.mxu0 0.0
      %425 = vmatprep.subr.mxu0 0.0
      %426 = vmatpush2.msra.mxu0 0.0
      %427 = vmatprep.subr.mxu0 0.0
      %428 = vmatpush2.msra.mxu0 0.0
      %429 = vmatprep.subr.mxu0 0.0
      %430 = vmatpush2.msra.mxu0 0.0
      %431 = vmatprep.subr.mxu0 0.0
      %432 = vmatpush2.msra.mxu0 0.0
      %433 = vmatprep.subr.mxu0 0.0
      %434 = vmatpush2.msra.mxu0 0.0
      %435 = vmatprep.subr.mxu0 0.0
      %436 = vmatpush2.msra.mxu0 0.0
      %437 = vmatprep.subr.mxu0 0.0
      %438 = vmatpush2.msra.mxu0 0.0
      %439 = vmatprep.subr.mxu0 0.0
      %440 = vmatpush2.msra.mxu0 0.0
      %441 = vmatprep.subr.mxu0 0.0
      %442 = vmatpush2.msra.mxu0 0.0
      %443 = vmatprep.subr.mxu0 0.0
      %444 = vmatpush2.msra.mxu0 0.0
      %445 = vmatprep.subr.mxu0 0.0
      %446 = vmatpush2.msra.mxu0 0.0
      %447 = vmatprep.subr.mxu0 0.0
      %448 = vmatpush2.msra.mxu0 0.0
      %449 = vmatprep.subr.mxu0 0.0
      %450 = vmatpush2.msra.mxu0 0.0
      %451 = vmatprep.subr.mxu0 0.0
      %452 = vmatpush2.msra.mxu0 0.0
      %453 = vmatprep.mubr.f32.mxu0 0.0
      %454 = vmatmul.mubr.f32.gmra.mxu0 %v314
      %v455 = vpop.f32.mrf.mxu0
      %v456 = vadd.f32 %v377, %v455
      %v457 = vpop.f32.mrf.mxu0
      %v458 = vadd.f32 %v381, %v457
      %459 = vdwg.mxu0
      %460 = vmatprep.subr.mxu0 0.0
      %461 = vmatpush1.msra.mxu0 %v371
      %462 = vmatprep.subr.mxu0 0.0
      %463 = vmatpush1.msra.mxu0 %v368
      %464 = vmatprep.subr.mxu0 0.0
      %465 = vmatpush1.msra.mxu0 %v365
      %466 = vmatprep.subr.mxu0 0.0
      %467 = vmatpush1.msra.mxu0 %v362
      %468 = vmatprep.subr.mxu0 0.0
      %469 = vmatpush1.msra.mxu0 %v359
      %470 = vmatprep.subr.mxu0 0.0
      %471 = vmatpush1.msra.mxu0 %v356
      %472 = vmatprep.subr.mxu0 0.0
      %473 = vmatpush1.msra.mxu0 %v353
      %474 = vmatprep.subr.mxu0 0.0
      %475 = vmatpush1.msra.mxu0 %v350
      %476 = vmatprep.subr.mxu0 0.0
      %477 = vmatpush1.msra.mxu0 %v347
      %478 = vmatprep.subr.mxu0 0.0
      %479 = vmatpush1.msra.mxu0 %v344
      %480 = vmatprep.subr.mxu0 0.0
      %481 = vmatpush1.msra.mxu0 %v341
      %482 = vmatprep.subr.mxu0 0.0
      %483 = vmatpush1.msra.mxu0 %v338
      %484 = vmatprep.subr.mxu0 0.0
      %485 = vmatpush1.msra.mxu0 %v335
      %486 = vmatprep.subr.mxu0 0.0
      %487 = vmatpush1.msra.mxu0 %v332
      %488 = vmatprep.subr.mxu0 0.0
      %489 = vmatpush1.msra.mxu0 %v329
      %490 = vmatprep.subr.mxu0 0.0
      %491 = vmatpush1.msra.mxu0 %v326
      %492 = vmatprep.subr.mxu0 0.0
      %493 = vmatpush2.msra.mxu0 0.0
      %494 = vmatprep.subr.mxu0 0.0
      %495 = vmatpush2.msra.mxu0 0.0
      %496 = vmatprep.subr.mxu0 0.0
      %497 = vmatpush2.msra.mxu0 0.0
      %498 = vmatprep.subr.mxu0 0.0
      %499 = vmatpush2.msra.mxu0 0.0
      %500 = vmatprep.subr.mxu0 0.0
      %501 = vmatpush2.msra.mxu0 0.0
      %502 = vmatprep.subr.mxu0 0.0
      %503 = vmatpush2.msra.mxu0 0.0
      %504 = vmatprep.subr.mxu0 0.0
      %505 = vmatpush2.msra.mxu0 0.0
      %506 = vmatprep.subr.mxu0 0.0
      %507 = vmatpush2.msra.mxu0 0.0
      %508 = vmatprep.subr.mxu0 0.0
      %509 = vmatpush2.msra.mxu0 0.0
      %510 = vmatprep.subr.mxu0 0.0
      %511 = vmatpush2.msra.mxu0 0.0
      %512 = vmatprep.subr.mxu0 0.0
      %513 = vmatpush2.msra.mxu0 0.0
      %514 = vmatprep.subr.mxu0 0.0
      %515 = vmatpush2.msra.mxu0 0.0
      %516 = vmatprep.subr.mxu0 0.0
      %517 = vmatpush2.msra.mxu0 0.0
      %518 = vmatprep.subr.mxu0 0.0
      %519 = vmatpush2.msra.mxu0 0.0
      %520 = vmatprep.subr.mxu0 0.0
      %521 = vmatpush2.msra.mxu0 0.0
      %522 = vmatprep.subr.mxu0 0.0
      %523 = vmatpush2.msra.mxu0 0.0
      %524 = vmatprep.mubr.f32.mxu0 0.0
      %525 = vmatmul.mubr.f32.gmra.mxu0 %v314
      %v526 = vpop.f32.mrf.mxu0
      %v527 = vadd.f32 %v385, %v526
      %v528 = vpop.f32.mrf.mxu0
      %529 = vdwg.mxu0
      %v530 = vadd.f32 %v323, %v456
      %v531 = vxor.u32 %v530, 2147483648
      %v532 = vmul.f32 %v531, 1.442695
      %v533 = vpow.pop %v532
      %v534 = vadd.f32 %v533, 1.0
      %v535 = vrcp.pop %v534
      %v536 = vmul.f32 1.0, %v535
      %v538 = vrot.slane %v323, 1
      %v540 = vadd.f32 %v538, %v458
      %v541 = vxor.u32 %v540, 2147483648
      %v542 = vmul.f32 %v541, 1.442695
      %v543 = vpow.pop %v542
      %v544 = vadd.f32 %v543, 1.0
      %v545 = vrcp.pop %v544
      %v546 = vmul.f32 1.0, %v545
      %v547 = vmul.f32 %v536, %v527
      %v548 = vrot.slane %v323, 2
      %v550 = vadd.f32 %v548, %v547
      %v551 = vtanh.pop %v550
      %v552 = vsub.f32 1.0, %v546
      %v553 = vmul.f32 %v552, %v551
      %v554 = vmul.f32 %v546, %v314
      %v555 = vadd.f32 %v553, %v554
      %v556 = vld [vmem:[#allocation11] sm:$0xff]
      %v557 = vld [vmem:[#allocation11 + $0x8] sm:$0xff]
      %v558 = vld [vmem:[#allocation11 + $0x10] sm:$0xff]
      %v559 = vld [vmem:[#allocation11 + $0x18] sm:$0xff]
      %v560 = vld [vmem:[#allocation11 + $0x20] sm:$0xff]
      %v561 = vld [vmem:[#allocation11 + $0x28] sm:$0xff]
      %v562 = vld [vmem:[#allocation11 + $0x30] sm:$0xff]
      %v563 = vld [vmem:[#allocation11 + $0x38] sm:$0xff]
      %v564 = vld [vmem:[#allocation11 + $0x40] sm:$0xff]
      %v565 = vld [vmem:[#allocation11 + $0x48] sm:$0xff]
      %v566 = vld [vmem:[#allocation11 + $0x50] sm:$0xff]
      %v567 = vld [vmem:[#allocation11 + $0x58] sm:$0xff]
      %v568 = vld [vmem:[#allocation11 + $0x60] sm:$0xff]
      %v569 = vld [vmem:[#allocation11 + $0x68] sm:$0xff]
      %v570 = vld [vmem:[#allocation11 + $0x70] sm:$0xff]
      %v571 = vld [vmem:[#allocation11 + $0x78] sm:$0xff]
      %v572 = vld [vmem:[#allocation11 + $0x80] sm:$0xff]
      %v573 = vld [vmem:[#allocation11 + $0x88] sm:$0xff]
      %v574 = vld [vmem:[#allocation11 + $0x90] sm:$0xff]
      %v575 = vld [vmem:[#allocation11 + $0x98] sm:$0xff]
      %v576 = vld [vmem:[#allocation11 + $0xa0] sm:$0xff]
      %v577 = vld [vmem:[#allocation11 + $0xa8] sm:$0xff]
      %v578 = vld [vmem:[#allocation11 + $0xb0] sm:$0xff]
      %v579 = vld [vmem:[#allocation11 + $0xb8] sm:$0xff]
      %v580 = vld [vmem:[#allocation11 + $0xc0] sm:$0xff]
      %v581 = vld [vmem:[#allocation11 + $0xc8] sm:$0xff]
      %v582 = vld [vmem:[#allocation11 + $0xd0] sm:$0xff]
      %v583 = vld [vmem:[#allocation11 + $0xd8] sm:$0xff]
      %v584 = vld [vmem:[#allocation11 + $0xe0] sm:$0xff]
      %v585 = vld [vmem:[#allocation11 + $0xe8] sm:$0xff]
      %v586 = vld [vmem:[#allocation11 + $0xf0] sm:$0xff]
      %v587 = vld [vmem:[#allocation11 + $0xf8] sm:$0xff]
      %v588 = vld [vmem:[#allocation11 + $0x100] sm:$0xff]
      %v589 = vld [vmem:[#allocation11 + $0x108] sm:$0xff]
      %v590 = vld [vmem:[#allocation11 + $0x110] sm:$0xff]
      %v591 = vld [vmem:[#allocation11 + $0x118] sm:$0xff]
      %v592 = vld [vmem:[#allocation11 + $0x120] sm:$0xff]
      %v593 = vld [vmem:[#allocation11 + $0x128] sm:$0xff]
      %v594 = vld [vmem:[#allocation11 + $0x130] sm:$0xff]
      %v595 = vld [vmem:[#allocation11 + $0x138] sm:$0xff]
      %v596 = vld [vmem:[#allocation11 + $0x140] sm:$0xff]
      %v597 = vld [vmem:[#allocation11 + $0x148] sm:$0xff]
      %v598 = vld [vmem:[#allocation11 + $0x150] sm:$0xff]
      %v599 = vld [vmem:[#allocation11 + $0x158] sm:$0xff]
      %v600 = vld [vmem:[#allocation11 + $0x160] sm:$0xff]
      %v601 = vld [vmem:[#allocation11 + $0x168] sm:$0xff]
      %v602 = vld [vmem:[#allocation11 + $0x170] sm:$0xff]
      %v603 = vld [vmem:[#allocation11 + $0x178] sm:$0xff]
      %v604 = vld [vmem:[#allocation11 + $0x180] sm:$0xff]
      %v605 = vld [vmem:[#allocation11 + $0x188] sm:$0xff]
      %v606 = vld [vmem:[#allocation11 + $0x190] sm:$0xff]
      %v607 = vld [vmem:[#allocation11 + $0x198] sm:$0xff]
      %v608 = vld [vmem:[#allocation11 + $0x1a0] sm:$0xff]
      %v609 = vld [vmem:[#allocation11 + $0x1a8] sm:$0xff]
      %v610 = vld [vmem:[#allocation11 + $0x1b0] sm:$0xff]
      %v611 = vld [vmem:[#allocation11 + $0x1b8] sm:$0xff]
      %v612 = vld [vmem:[#allocation11 + $0x1c0] sm:$0xff]
      %v613 = vld [vmem:[#allocation11 + $0x1c8] sm:$0xff]
      %v614 = vld [vmem:[#allocation11 + $0x1d0] sm:$0xff]
      %v615 = vld [vmem:[#allocation11 + $0x1d8] sm:$0xff]
      %v616 = vld [vmem:[#allocation11 + $0x1e0] sm:$0xff]
      %v617 = vld [vmem:[#allocation11 + $0x1e8] sm:$0xff]
      %v618 = vld [vmem:[#allocation11 + $0x1f0] sm:$0xff]
      %v619 = vld [vmem:[#allocation11 + $0x1f8] sm:$0xff]
      %v620 = vld [vmem:[#allocation11 + $0x200] sm:$0xff]
      %v621 = vld [vmem:[#allocation11 + $0x208] sm:$0xff]
      %v622 = vld [vmem:[#allocation11 + $0x210] sm:$0xff]
      %v623 = vld [vmem:[#allocation11 + $0x218] sm:$0xff]
      %v624 = vld [vmem:[#allocation11 + $0x220] sm:$0xff]
      %v625 = vld [vmem:[#allocation11 + $0x228] sm:$0xff]
      %v626 = vld [vmem:[#allocation11 + $0x230] sm:$0xff]
      %v627 = vld [vmem:[#allocation11 + $0x238] sm:$0xff]
      %v628 = vld [vmem:[#allocation11 + $0x240] sm:$0xff]
      %v629 = vld [vmem:[#allocation11 + $0x248] sm:$0xff]
      %v630 = vld [vmem:[#allocation11 + $0x250] sm:$0xff]
      %v631 = vld [vmem:[#allocation11 + $0x258] sm:$0xff]
      %v632 = vld [vmem:[#allocation11 + $0x260] sm:$0xff]
      %v633 = vld [vmem:[#allocation11 + $0x268] sm:$0xff]
      %v634 = vld [vmem:[#allocation11 + $0x270] sm:$0xff]
      %v635 = vld [vmem:[#allocation11 + $0x278] sm:$0xff]
      %v636 = vld [vmem:[#allocation11 + $0x280] sm:$0xff]
      %v637 = vld [vmem:[#allocation11 + $0x288] sm:$0xff]
      %v638 = vld [vmem:[#allocation11 + $0x290] sm:$0xff]
      %v639 = vld [vmem:[#allocation11 + $0x298] sm:$0xff]
      %v640 = vld [vmem:[#allocation11 + $0x2a0] sm:$0xff]
      %v641 = vld [vmem:[#allocation11 + $0x2a8] sm:$0xff]
      %v642 = vld [vmem:[#allocation11 + $0x2b0] sm:$0xff]
      %v643 = vld [vmem:[#allocation11 + $0x2b8] sm:$0xff]
      %v644 = vld [vmem:[#allocation11 + $0x2c0] sm:$0xff]
      %v645 = vld [vmem:[#allocation11 + $0x2c8] sm:$0xff]
      %v646 = vld [vmem:[#allocation11 + $0x2d0] sm:$0xff]
      %v647 = vld [vmem:[#allocation11 + $0x2d8] sm:$0xff]
      %v648 = vld [vmem:[#allocation11 + $0x2e0] sm:$0xff]
      %v649 = vld [vmem:[#allocation11 + $0x2e8] sm:$0xff]
      %v650 = vld [vmem:[#allocation11 + $0x2f0] sm:$0xff]
      %v651 = vld [vmem:[#allocation11 + $0x2f8] sm:$0xff]
      %v652 = vld [vmem:[%s7] sm:$0x3f]
      %v654 = vlaneseq
      %v655 = vshrl.u32 %v654, 7
      %v656 = vsub.s32 0, %v655
      %v657 = vrot.slane %v652, %v656
      %v658 = vlaneseq
      %v659 = vshrl.u32 %v658, 7
      %v660 = vsub.s32 1, %v659
      %v661 = vrot.slane %v652, %v660
      %v662 = vlaneseq
      %v663 = vshrl.u32 %v662, 7
      %v664 = vsub.s32 2, %v663
      %v665 = vrot.slane %v652, %v664
      %v666 = vlaneseq
      %v667 = vshrl.u32 %v666, 7
      %v668 = vsub.s32 3, %v667
      %v669 = vrot.slane %v652, %v668
      %v670 = vlaneseq
      %v671 = vshrl.u32 %v670, 7
      %v672 = vsub.s32 4, %v671
      %v673 = vrot.slane %v652, %v672
      %v674 = vlaneseq
      %v675 = vshrl.u32 %v674, 7
      %v676 = vsub.s32 5, %v675
      %v677 = vrot.slane %v652, %v676
      %684 = vmatprep.subr.mxu0 %v647
      %685 = vmatpush1.msra.mxu0 %v646
      %686 = vmatprep.subr.mxu0 %v641
      %687 = vmatpush1.msra.mxu0 %v640
      %688 = vmatprep.subr.mxu0 %v635
      %689 = vmatpush1.msra.mxu0 %v634
      %690 = vmatprep.subr.mxu0 %v629
      %691 = vmatpush1.msra.mxu0 %v628
      %692 = vmatprep.subr.mxu0 %v623
      %693 = vmatpush1.msra.mxu0 %v622
      %694 = vmatprep.subr.mxu0 %v617
      %695 = vmatpush1.msra.mxu0 %v616
      %696 = vmatprep.subr.mxu0 %v611
      %697 = vmatpush1.msra.mxu0 %v610
      %698 = vmatprep.subr.mxu0 %v605
      %699 = vmatpush1.msra.mxu0 %v604
      %700 = vmatprep.subr.mxu0 %v599
      %701 = vmatpush1.msra.mxu0 %v598
      %702 = vmatprep.subr.mxu0 %v593
      %703 = vmatpush1.msra.mxu0 %v592
      %704 = vmatprep.subr.mxu0 %v587
      %705 = vmatpush1.msra.mxu0 %v586
      %706 = vmatprep.subr.mxu0 %v581
      %707 = vmatpush1.msra.mxu0 %v580
      %708 = vmatprep.subr.mxu0 %v575
      %709 = vmatpush1.msra.mxu0 %v574
      %710 = vmatprep.subr.mxu0 %v569
      %711 = vmatpush1.msra.mxu0 %v568
      %712 = vmatprep.subr.mxu0 %v563
      %713 = vmatpush1.msra.mxu0 %v562
      %714 = vmatprep.subr.mxu0 %v557
      %715 = vmatpush1.msra.mxu0 %v556
      %716 = vmatprep.subr.mxu0 0.0
      %717 = vmatpush2.msra.mxu0 0.0
      %718 = vmatprep.subr.mxu0 0.0
      %719 = vmatpush2.msra.mxu0 0.0
      %720 = vmatprep.subr.mxu0 0.0
      %721 = vmatpush2.msra.mxu0 0.0
      %722 = vmatprep.subr.mxu0 0.0
      %723 = vmatpush2.msra.mxu0 0.0
      %724 = vmatprep.subr.mxu0 0.0
      %725 = vmatpush2.msra.mxu0 0.0
      %726 = vmatprep.subr.mxu0 0.0
      %727 = vmatpush2.msra.mxu0 0.0
      %728 = vmatprep.subr.mxu0 0.0
      %729 = vmatpush2.msra.mxu0 0.0
      %730 = vmatprep.subr.mxu0 0.0
      %731 = vmatpush2.msra.mxu0 0.0
      %732 = vmatprep.subr.mxu0 0.0
      %733 = vmatpush2.msra.mxu0 0.0
      %734 = vmatprep.subr.mxu0 0.0
      %735 = vmatpush2.msra.mxu0 0.0
      %736 = vmatprep.subr.mxu0 0.0
      %737 = vmatpush2.msra.mxu0 0.0
      %738 = vmatprep.subr.mxu0 0.0
      %739 = vmatpush2.msra.mxu0 0.0
      %740 = vmatprep.subr.mxu0 0.0
      %741 = vmatpush2.msra.mxu0 0.0
      %742 = vmatprep.subr.mxu0 0.0
      %743 = vmatpush2.msra.mxu0 0.0
      %744 = vmatprep.subr.mxu0 0.0
      %745 = vmatpush2.msra.mxu0 0.0
      %746 = vmatprep.subr.mxu0 0.0
      %747 = vmatpush2.msra.mxu0 0.0
      %748 = vmatprep.mubr.f32.mxu0 0.0
      %749 = vmatmul.mubr.f32.gmra.mxu0 %v555
      %v750 = vpop.f32.mrf.mxu0
      %v751 = vadd.f32 %v657, %v750
      %v752 = vpop.f32.mrf.mxu0
      %v753 = vadd.f32 %v661, %v752
      %754 = vdwg.mxu0
      %755 = vmatprep.subr.mxu0 %v649
      %756 = vmatpush1.msra.mxu0 %v648
      %757 = vmatprep.subr.mxu0 %v643
      %758 = vmatpush1.msra.mxu0 %v642
      %759 = vmatprep.subr.mxu0 %v637
      %760 = vmatpush1.msra.mxu0 %v636
      %761 = vmatprep.subr.mxu0 %v631
      %762 = vmatpush1.msra.mxu0 %v630
      %763 = vmatprep.subr.mxu0 %v625
      %764 = vmatpush1.msra.mxu0 %v624
      %765 = vmatprep.subr.mxu0 %v619
      %766 = vmatpush1.msra.mxu0 %v618
      %767 = vmatprep.subr.mxu0 %v613
      %768 = vmatpush1.msra.mxu0 %v612
      %769 = vmatprep.subr.mxu0 %v607
      %770 = vmatpush1.msra.mxu0 %v606
      %771 = vmatprep.subr.mxu0 %v601
      %772 = vmatpush1.msra.mxu0 %v600
      %773 = vmatprep.subr.mxu0 %v595
      %774 = vmatpush1.msra.mxu0 %v594
      %775 = vmatprep.subr.mxu0 %v589
      %776 = vmatpush1.msra.mxu0 %v588
      %777 = vmatprep.subr.mxu0 %v583
      %778 = vmatpush1.msra.mxu0 %v582
      %779 = vmatprep.subr.mxu0 %v577
      %780 = vmatpush1.msra.mxu0 %v576
      %781 = vmatprep.subr.mxu0 %v571
      %782 = vmatpush1.msra.mxu0 %v570
      %783 = vmatprep.subr.mxu0 %v565
      %784 = vmatpush1.msra.mxu0 %v564
      %785 = vmatprep.subr.mxu0 %v559
      %786 = vmatpush1.msra.mxu0 %v558
      %787 = vmatprep.subr.mxu0 0.0
      %788 = vmatpush2.msra.mxu0 0.0
      %789 = vmatprep.subr.mxu0 0.0
      %790 = vmatpush2.msra.mxu0 0.0
      %791 = vmatprep.subr.mxu0 0.0
      %792 = vmatpush2.msra.mxu0 0.0
      %793 = vmatprep.subr.mxu0 0.0
      %794 = vmatpush2.msra.mxu0 0.0
      %795 = vmatprep.subr.mxu0 0.0
      %796 = vmatpush2.msra.mxu0 0.0
      %797 = vmatprep.subr.mxu0 0.0
      %798 = vmatpush2.msra.mxu0 0.0
      %799 = vmatprep.subr.mxu0 0.0
      %800 = vmatpush2.msra.mxu0 0.0
      %801 = vmatprep.subr.mxu0 0.0
      %802 = vmatpush2.msra.mxu0 0.0
      %803 = vmatprep.subr.mxu0 0.0
      %804 = vmatpush2.msra.mxu0 0.0
      %805 = vmatprep.subr.mxu0 0.0
      %806 = vmatpush2.msra.mxu0 0.0
      %807 = vmatprep.subr.mxu0 0.0
      %808 = vmatpush2.msra.mxu0 0.0
      %809 = vmatprep.subr.mxu0 0.0
      %810 = vmatpush2.msra.mxu0 0.0
      %811 = vmatprep.subr.mxu0 0.0
      %812 = vmatpush2.msra.mxu0 0.0
      %813 = vmatprep.subr.mxu0 0.0
      %814 = vmatpush2.msra.mxu0 0.0
      %815 = vmatprep.subr.mxu0 0.0
      %816 = vmatpush2.msra.mxu0 0.0
      %817 = vmatprep.subr.mxu0 0.0
      %818 = vmatpush2.msra.mxu0 0.0
      %819 = vmatprep.mubr.f32.mxu0 0.0
      %820 = vmatmul.mubr.f32.gmra.mxu0 %v555
      %v821 = vpop.f32.mrf.mxu0
      %v822 = vadd.f32 %v665, %v821
      %v823 = vpop.f32.mrf.mxu0
      %v824 = vadd.f32 %v669, %v823
      %825 = vdwg.mxu0
      %826 = vmatprep.subr.mxu0 %v651
      %827 = vmatpush1.msra.mxu0 %v650
      %828 = vmatprep.subr.mxu0 %v645
      %829 = vmatpush1.msra.mxu0 %v644
      %830 = vmatprep.subr.mxu0 %v639
      %831 = vmatpush1.msra.mxu0 %v638
      %832 = vmatprep.subr.mxu0 %v633
      %833 = vmatpush1.msra.mxu0 %v632
      %834 = vmatprep.subr.mxu0 %v627
      %835 = vmatpush1.msra.mxu0 %v626
      %836 = vmatprep.subr.mxu0 %v621
      %837 = vmatpush1.msra.mxu0 %v620
      %838 = vmatprep.subr.mxu0 %v615
      %839 = vmatpush1.msra.mxu0 %v614
      %840 = vmatprep.subr.mxu0 %v609
      %841 = vmatpush1.msra.mxu0 %v608
      %842 = vmatprep.subr.mxu0 %v603
      %843 = vmatpush1.msra.mxu0 %v602
      %844 = vmatprep.subr.mxu0 %v597
      %845 = vmatpush1.msra.mxu0 %v596
      %846 = vmatprep.subr.mxu0 %v591
      %847 = vmatpush1.msra.mxu0 %v590
      %848 = vmatprep.subr.mxu0 %v585
      %849 = vmatpush1.msra.mxu0 %v584
      %850 = vmatprep.subr.mxu0 %v579
      %851 = vmatpush1.msra.mxu0 %v578
      %852 = vmatprep.subr.mxu0 %v573
      %853 = vmatpush1.msra.mxu0 %v572
      %854 = vmatprep.subr.mxu0 %v567
      %855 = vmatpush1.msra.mxu0 %v566
      %856 = vmatprep.subr.mxu0 %v561
      %857 = vmatpush1.msra.mxu0 %v560
      %858 = vmatprep.subr.mxu0 0.0
      %859 = vmatpush2.msra.mxu0 0.0
      %860 = vmatprep.subr.mxu0 0.0
      %861 = vmatpush2.msra.mxu0 0.0
      %862 = vmatprep.subr.mxu0 0.0
      %863 = vmatpush2.msra.mxu0 0.0
      %864 = vmatprep.subr.mxu0 0.0
      %865 = vmatpush2.msra.mxu0 0.0
      %866 = vmatprep.subr.mxu0 0.0
      %867 = vmatpush2.msra.mxu0 0.0
      %868 = vmatprep.subr.mxu0 0.0
      %869 = vmatpush2.msra.mxu0 0.0
      %870 = vmatprep.subr.mxu0 0.0
      %871 = vmatpush2.msra.mxu0 0.0
      %872 = vmatprep.subr.mxu0 0.0
      %873 = vmatpush2.msra.mxu0 0.0
      %874 = vmatprep.subr.mxu0 0.0
      %875 = vmatpush2.msra.mxu0 0.0
      %876 = vmatprep.subr.mxu0 0.0
      %877 = vmatpush2.msra.mxu0 0.0
      %878 = vmatprep.subr.mxu0 0.0
      %879 = vmatpush2.msra.mxu0 0.0
      %880 = vmatprep.subr.mxu0 0.0
      %881 = vmatpush2.msra.mxu0 0.0
      %882 = vmatprep.subr.mxu0 0.0
      %883 = vmatpush2.msra.mxu0 0.0
      %884 = vmatprep.subr.mxu0 0.0
      %885 = vmatpush2.msra.mxu0 0.0
      %886 = vmatprep.subr.mxu0 0.0
      %887 = vmatpush2.msra.mxu0 0.0
      %888 = vmatprep.subr.mxu0 0.0
      %889 = vmatpush2.msra.mxu0 0.0
      %890 = vmatprep.mubr.f32.mxu0 0.0
      %891 = vmatmul.mubr.f32.gmra.mxu0 %v555
      %v892 = vpop.f32.mrf.mxu0
      %v893 = vadd.f32 %v673, %v892
      %v894 = vpop.f32.mrf.mxu0
      %v895 = vadd.f32 %v677, %v894
      %896 = vdwg.mxu0
      %v897 = vadd.f32 %v751, %v824
      %v898 = vxor.u32 %v897, 2147483648
      %v899 = vmul.f32 %v898, 1.442695
      %v900 = vpow.pop %v899
      %v901 = vadd.f32 %v900, 1.0
      %v902 = vrcp.pop %v901
      %v903 = vmul.f32 1.0, %v902
      %v904 = vadd.f32 %v753, %v893
      %v905 = vxor.u32 %v904, 2147483648
      %v906 = vmul.f32 %v905, 1.442695
      %v907 = vpow.pop %v906
      %v908 = vadd.f32 %v907, 1.0
      %v909 = vrcp.pop %v908
      %v910 = vmul.f32 1.0, %v909
      %v911 = vmul.f32 %v903, %v895
      %v912 = vadd.f32 %v822, %v911
      %v913 = vtanh.pop %v912
      %v914 = vsub.f32 1.0, %v910
      %v915 = vmul.f32 %v914, %v913
      %v916 = vmul.f32 %v910, %v555
      %v917 = vadd.f32 %v915, %v916
      %s918 = scalar_lea.vmem [#allocation12], %s309
      %919 = vst [vmem:[%s918] sm:$0x1] %v917
    $region58: #{tpu_custom_call.1} parent=1 // loop_footer
      %s313 = sadd.s32 1, %s309
    $region59: #{tpu_custom_call.1} parent=1 // loop_footer_branch
      %308 = sbr.rel target = $region55
    $region60: #{tpu_custom_call.1} parent=1 // loop_exit
      _
    %920 = vst [vmem:[#allocation13] sm:$0x1] %v314
    // Predicated region
    $region61: #{tpu_custom_call.1} parent=1 // pred_check
      _
    $region62: #{tpu_custom_call.1} parent=1 // pred_check_branch
      %922 = sbr.rel (0) target = $region64
    $region63: #{tpu_custom_call.1} parent=1 // pred_region
      %s924 = ssub.s32 128, 128
      %925 = vsyncadd [#allocation5], %s924
      %s927 = sshll.u32 [#allocation12], 4
      %s928 = int_to_ptr.vmem [resolvable:$true] %s927
      %930 = dma.vmem_to_hbm [thread:$0]  %s928, 128, %s8, [#allocation5]
    $region64: #{tpu_custom_call.1} parent=1 // pred_fallthru
      _
    // Predicated region
    $region65: #{tpu_custom_call.1} parent=1 // pred_check
      _
    $region66: #{tpu_custom_call.1} parent=1 // pred_check_branch
      %932 = sbr.rel (0) target = $region68
    $region67: #{tpu_custom_call.1} parent=1 // pred_region
      %s934 = ssub.s32 16, 16
      %935 = vsyncadd [#allocation14], %s934
      %s937 = sshll.u32 [#allocation13], 4
      %s938 = int_to_ptr.vmem [resolvable:$true] %s937
      %940 = dma.vmem_to_hbm [thread:$0]  %s938, 16, %s9, [#allocation14]
    $region68: #{tpu_custom_call.1} parent=1 // pred_fallthru
      _
    // Predicated region
    $region69: #{tpu_custom_call.1} parent=1 // pred_check
      _
    $region70: #{tpu_custom_call.1} parent=1 // pred_check_branch
      %942 = sbr.rel (0) target = $region72
    $region71: #{tpu_custom_call.1} parent=1 // pred_region
      %943 = dma.done [#allocation5], 128
    $region72: #{tpu_custom_call.1} parent=1 // pred_fallthru
      _
    // Predicated region
    $region73: #{tpu_custom_call.1} parent=1 // pred_check
      _
    $region74: #{tpu_custom_call.1} parent=1 // pred_check_branch
      %945 = sbr.rel (0) target = $region76
    $region75: #{tpu_custom_call.1} parent=1 // pred_region
      %946 = dma.done [#allocation14], 16
    $region76: #{tpu_custom_call.1} parent=1 // pred_fallthru
      _
    %947 = vsyncpa [#allocation4], 1
    %948 = vsyncpa [#allocation7], 1
    %949 = vsyncpa [#allocation10], 1
    %950 = vsyncpa [#allocation5], 1
    %951 = vsyncpa [#allocation14], 1

</llo_original>
